<compile_context>
chip_gen: v5e
topology: v5e:2x2
jax: 0.10.0
libtpu: 0.0.40
codegen_flags: <defaults>
</compile_context>

<pallas_src>
import jax
import jax.numpy as jnp
import numpy as np
from jax.experimental import pallas as pl
from jax.experimental.pallas import tpu as pltpu

# --- small, forward-consistent dims (torch defaults scaled down) ---
B = 8          # batch for the tiny smoke test
DATA = 32      # data_dims  (size of x)
LABEL = 32     # label_dims (size of y)
LATENT = 4     # latent_dims
HIDDEN = 128   # hidden_dims
LN_EPS = 1e-5  # torch.nn.LayerNorm default
PACK_W = 128   # lane-dense activation slab width: [y(32) | x(32) | eps(4) | 0 ...]
MAX_BM = 256   # rows per grid step (fills the 256x256 MXU on v6e/v7x; >1 step for big batches)


def _ln_relu(h, g, b):
    """relu(LayerNorm(h)) with affine params g, b (broadcast over batch). f32 VPU/EUP math."""
    m = jnp.mean(h, axis=-1, keepdims=True)
    v = jnp.mean(jnp.square(h - m), axis=-1, keepdims=True)
    return jnp.maximum((h - m) * jax.lax.rsqrt(v + LN_EPS) * g + b, 0.0)


def cvae_kernel(acts_ref, w_sq_ref, w_z_ref, vecs_ref, out_ref):
    f32, bf16 = jnp.float32, jnp.bfloat16

    acts = acts_ref[...]          # (bm, 128) bf16: [y | x | eps | zeros]
    vecs = vecs_ref[...]          # (16, 128) f32 bias/gain/beta slab

    # ---- encoder ----
    # layer 0: full-width dot; weight rows 64:128 are zero so the eps/pad lanes are ignored.
    h = jnp.dot(acts, w_sq_ref[0], preferred_element_type=f32) + vecs[0:1]
    h = _ln_relu(h, vecs[1:2], vecs[2:3])
    h = jnp.dot(h.astype(bf16), w_sq_ref[1], preferred_element_type=f32) + vecs[3:4]
    h = _ln_relu(h, vecs[4:5], vecs[5:6])
    # fused heads, zero-padded to 128 columns: lanes [0:4] = mu, [4:8] = log_std
    eh = jnp.dot(h.astype(bf16), w_sq_ref[2], preferred_element_type=f32) + vecs[12:13]
    mu = eh[:, :LATENT]
    sigma = jnp.exp(eh[:, LATENT:2 * LATENT])
    eps = acts[:, LABEL + DATA:LABEL + DATA + LATENT].astype(f32)
    z = mu + sigma * eps          # reparameterization

    # ---- decoder ----
    # layer 0 without any concat: x-path = full-width dot with a weight whose only
    # non-zero rows sit at x's lane slot (32:64); z-path = tiny K=4 dot (MXU is idle).
    d = (jnp.dot(acts, w_sq_ref[3], preferred_element_type=f32)
         + jnp.dot(z.astype(bf16), w_z_ref[...], preferred_element_type=f32)
         + vecs[6:7])
    d = _ln_relu(d, vecs[7:8], vecs[8:9])
    d = jnp.dot(d.astype(bf16), w_sq_ref[4], preferred_element_type=f32) + vecs[9:10]
    d = _ln_relu(d, vecs[10:11], vecs[11:12])
    # fused heads, zero-padded to 128 cols: lanes [0:32] = mean, [32:64] = log_std -> exp
    dh = jnp.dot(d.astype(bf16), w_sq_ref[5], preferred_element_type=f32) + vecs[13:14]
    lane = jax.lax.broadcasted_iota(jnp.int32, dh.shape, 1)
    out_ref[...] = jnp.where(lane < LABEL, dh, jnp.exp(dh))   # one unmasked (bm, 128) store


@jax.jit
def cvae_forward(y, x, eps, packed):
    """Packed-slab wrapper.  Batch tiled at up to MAX_BM rows; ragged sizes padded + sliced."""
    bsz = y.shape[0]
    w_sq, w_z, vecs = packed

    bm = bsz if bsz <= MAX_BM else MAX_BM     # <=256-row tiles; >256 rows -> >=2 grid steps (v7x)
    padded = pl.cdiv(bsz, bm) * bm            # ragged batches zero-padded, sliced back below

    # TODO(synk): in production the producer should emit this packed bf16 layout directly
    # instead of materializing an extra (padded, 128) HBM array per call.
    acts = jnp.concatenate([y, x, eps], axis=1).astype(jnp.bfloat16)
    acts = jnp.pad(acts, ((0, padded - bsz), (0, PACK_W - (LABEL + DATA + LATENT))))

    def invariant(shape):                      # grid-invariant operands (constant index map)
        return pl.BlockSpec(shape, lambda i: (0,) * len(shape))

    out = pl.pallas_call(
        cvae_kernel,
        out_shape=jax.ShapeDtypeStruct((padded, PACK_W), jnp.float32),
        grid=(padded // bm,),
        in_specs=[
            pl.BlockSpec((bm, PACK_W), lambda i: (i, 0)),      # activations (batch-tiled)
            invariant(w_sq.shape), invariant(w_z.shape), invariant(vecs.shape),
        ],
        out_specs=pl.BlockSpec((bm, PACK_W), lambda i: (i, 0)),
        compiler_params=pltpu.CompilerParams(
            dimension_semantics=("parallel",)),                # megacore-shardable batch axis
    )(acts, w_sq, w_z, vecs)
    return out[:bsz, :LABEL], out[:bsz, LABEL:2 * LABEL]


def make_params(key):
    """Deterministic synthetic parameters in the raw torch layout (f32)."""
    ks = list(jax.random.split(key, 16))

    def w(k, shape, scale=0.05):
        return (scale * jax.random.normal(k, shape)).astype(jnp.float32)

    zeros = lambda n: jnp.zeros((1, n), jnp.float32)
    ones = lambda n: jnp.ones((1, n), jnp.float32)

    return [
        # encoder layer 0: Linear(LABEL+DATA -> HIDDEN), split into y / x parts
        w(ks[0], (LABEL, HIDDEN)), w(ks[1], (DATA, HIDDEN)), zeros(HIDDEN), ones(HIDDEN), zeros(HIDDEN),
        # encoder layer 1: Linear(HIDDEN -> HIDDEN)
        w(ks[2], (HIDDEN, HIDDEN)), zeros(HIDDEN), ones(HIDDEN), zeros(HIDDEN),
        # encoder heads: mean / log_std (HIDDEN -> LATENT)
        w(ks[3], (HIDDEN, LATENT)), zeros(LATENT), w(ks[4], (HIDDEN, LATENT), 0.01), zeros(LATENT),
        # decoder layer 0: Linear(LATENT+DATA -> HIDDEN), split into z / x parts
        w(ks[5], (LATENT, HIDDEN)), w(ks[6], (DATA, HIDDEN)), zeros(HIDDEN), ones(HIDDEN), zeros(HIDDEN),
        # decoder layer 1: Linear(HIDDEN -> HIDDEN)
        w(ks[7], (HIDDEN, HIDDEN)), zeros(HIDDEN), ones(HIDDEN), zeros(HIDDEN),
        # decoder heads: final_linear1 / final_log_std1 (HIDDEN -> LABEL)
        w(ks[8], (HIDDEN, LABEL)), zeros(LABEL), w(ks[9], (HIDDEN, LABEL), 0.01), zeros(LABEL),
    ]


def pack_params(p):
    """Host-side packing into 3 slabs (weights bf16 for the MXU, vectors f32)."""
    (ew0y, ew0x, eb0, eg0, ebt0,
     ew1, eb1, eg1, ebt1,
     wmu, bmu, wls, bls,
     dw0z, dw0x, db0, dg0, dbt0,
     dw1, db1, dg1, dbt1,
     wm, bmn, ws, bs) = p
    bf16 = jnp.bfloat16

    # 128x128 weights (zero-padded so full-width dots of the acts slab are exact):
    w_e0 = jnp.pad(jnp.concatenate([ew0y, ew0x], 0),
                   ((0, HIDDEN - LABEL - DATA), (0, 0)))            # rows 0:64 live ([y|x] lanes)
    w_d0x = jnp.pad(dw0x, ((LABEL, HIDDEN - LABEL - DATA), (0, 0)))  # rows 32:64 live (x lanes)
    w_eh = jnp.pad(jnp.concatenate([wmu, wls], 1),
                   ((0, 0), (0, HIDDEN - 2 * LATENT)))               # cols 0:8 live (mu|log_std)
    w_dh = jnp.pad(jnp.concatenate([wm, ws], 1),
                   ((0, 0), (0, HIDDEN - 2 * LABEL)))                # cols 0:64 live (mean|log_std)
    w_sq = jnp.stack([w_e0, ew1, w_eh, w_d0x, dw1, w_dh], 0).astype(bf16)   # (6, 128, 128)

    w_z = dw0z.astype(bf16)                                          # (4, 128) decoder z-weight

    def pad_lane(v):                                                 # (1, n) -> (1, HIDDEN)
        return jnp.pad(v, ((0, 0), (0, HIDDEN - v.shape[1])))

    eh_bias = pad_lane(jnp.concatenate([bmu, bls], 1))               # lanes [0:8]
    dh_bias = pad_lane(jnp.concatenate([bmn, bs], 1))                # lanes [0:64]
    vecs = jnp.concatenate(
        [eb0, eg0, ebt0, eb1, eg1, ebt1,
         db0, dg0, dbt0, db1, dg1, dbt1,
         eh_bias, dh_bias, jnp.zeros((2, HIDDEN), jnp.float32)], 0).astype(jnp.float32)  # (16, 128)
    return [w_sq, w_z, vecs]


def cvae_reference(y, x, eps, params):
    """Pure-JAX f32 reference of the same forward pass (for correctness check)."""
    (ew0y, ew0x, eb0, eg0, ebt0,
     ew1, eb1, eg1, ebt1,
     wmu, bmu, wls, bls,
     dw0z, dw0x, db0, dg0, dbt0,
     dw1, db1, dg1, dbt1,
     wm, bmn, ws, bs) = params

    def ln_relu(h, g, b):
        m = h.mean(-1, keepdims=True)
        v = ((h - m) ** 2).mean(-1, keepdims=True)
        return jnp.maximum((h - m) / jnp.sqrt(v + LN_EPS) * g + b, 0.0)

    h = jnp.concatenate([y, x], 1) @ jnp.concatenate([ew0y, ew0x], 0) + eb0
    h = ln_relu(h, eg0, ebt0)
    h = ln_relu(h @ ew1 + eb1, eg1, ebt1)
    mu = h @ wmu + bmu
    sigma = jnp.exp(h @ wls + bls)
    z = mu + sigma * eps
    d = jnp.concatenate([z, x], 1) @ jnp.concatenate([dw0z, dw0x], 0) + db0
    d = ln_relu(d, dg0, dbt0)
    d = ln_relu(d @ dw1 + db1, dg1, dbt1)
    return d @ wm + bmn, jnp.exp(d @ ws + bs)


if __name__ == "__main__":
    key = jax.random.PRNGKey(0)
    k_y, k_x, k_eps, k_p, k_y2, k_x2, k_e2 = jax.random.split(key, 7)

    raw_params = make_params(k_p)
    packed_params = pack_params(raw_params)

    def run_and_check(bsz, ky, kx, ke):
        y = jax.random.normal(ky, (bsz, LABEL), jnp.float32)
        x = jax.random.normal(kx, (bsz, DATA), jnp.float32)
        # reparameterization noise (torch uses self.N.sample(mu.shape)); passed in explicitly
        eps = jax.random.normal(ke, (bsz, LATENT), jnp.float32)
        y_hat_mean, y_hat_std = jax.block_until_ready(cvae_forward(y, x, eps, packed_params))
        with jax.default_matmul_precision("highest"):
            ref_mean, ref_std = cvae_reference(y, x, eps, raw_params)
        # Tolerance covers bf16 MXU operands + bf16 activation slab (accumulation stays f32).
        np.testing.assert_allclose(np.asarray(y_hat_mean), np.asarray(ref_mean), rtol=2e-2, atol=2e-2)
        np.testing.assert_allclose(np.asarray(y_hat_std), np.asarray(ref_std), rtol=2e-2, atol=2e-2)
        assert y_hat_mean.shape == (bsz, LABEL) and y_hat_std.shape == (bsz, LABEL)

    run_and_check(B, k_y, k_x, k_eps)       # tiny batch: single 8-row grid step
    run_and_check(300, k_y2, k_x2, k_e2)    # ragged batch: padded to 2 x 256-row parallel steps
    print("KERNEL_OK")
</pallas_src>

<mosaic_0001>
module attributes {stable_mosaic.version = 11 : i64} {
  func.func @cvae_kernel(%arg0: i32, %arg1: memref<8x128xbf16, #tpu.memory_space<vmem>>, %arg2: memref<6x128x128xbf16, #tpu.memory_space<vmem>>, %arg3: memref<4x128xbf16, #tpu.memory_space<vmem>>, %arg4: memref<16x128xf32, #tpu.memory_space<vmem>>, %arg5: memref<8x128xf32, #tpu.memory_space<vmem>>) attributes {dimension_semantics = [#tpu.dimension_semantics<parallel>], iteration_bounds = array<i64: 1>, scalar_prefetch = 0 : i64, scratch_operands = 0 : i64, tpu.core_type = #tpu.core_type<tc>, window_params = [{transform_indices = @transform_0, window_bounds = array<i64: 8, 128>}, {pipeline_mode = #tpu.pipeline_mode<synchronous>, transform_indices = @transform_1, window_bounds = array<i64: 6, 128, 128>}, {pipeline_mode = #tpu.pipeline_mode<synchronous>, transform_indices = @transform_2, window_bounds = array<i64: 4, 128>}, {pipeline_mode = #tpu.pipeline_mode<synchronous>, transform_indices = @transform_3, window_bounds = array<i64: 16, 128>}, {transform_indices = @transform_4, window_bounds = array<i64: 8, 128>}]} {
    %c0 = arith.constant 0 : index
    %c0_0 = arith.constant 0 : index
    %0 = vector.load %arg1[%c0, %c0_0] : memref<8x128xbf16, #tpu.memory_space<vmem>>, vector<8x128xbf16>
    %c0_1 = arith.constant 0 : index
    %c0_2 = arith.constant 0 : index
    %1 = vector.load %arg4[%c0_1, %c0_2] : memref<16x128xf32, #tpu.memory_space<vmem>>, vector<16x128xf32>
    %c0_3 = arith.constant 0 : index
    %c0_4 = arith.constant 0 : index
    %c0_5 = arith.constant 0 : index
    %2 = vector.load %arg2[%c0_3, %c0_4, %c0_5] : memref<6x128x128xbf16, #tpu.memory_space<vmem>>, vector<1x128x128xbf16>
    %3 = vector.shape_cast %2 : vector<1x128x128xbf16> to vector<128x128xbf16>
    %cst = arith.constant dense<0.000000e+00> : vector<8x128xf32>
    %4 = tpu.matmul %0, %3, %cst {dimension_numbers = #tpu.dot_dimension_numbers<[1], [0], [0], [1], [0, 0, 1, 1], [], []>} : vector<8x128xbf16>, vector<128x128xbf16>, vector<8x128xf32> -> vector<8x128xf32>
    %5 = vector.extract_strided_slice %1 {offsets = [0, 0], sizes = [1, 128], strides = [1, 1]} : vector<16x128xf32> to vector<1x128xf32>
    %6 = vector.broadcast %5 : vector<1x128xf32> to vector<8x128xf32>
    %7 = arith.addf %4, %6 : vector<8x128xf32>
    %8 = vector.extract_strided_slice %1 {offsets = [1, 0], sizes = [1, 128], strides = [1, 1]} : vector<16x128xf32> to vector<1x128xf32>
    %9 = vector.extract_strided_slice %1 {offsets = [2, 0], sizes = [1, 128], strides = [1, 1]} : vector<16x128xf32> to vector<1x128xf32>
    %cst_6 = arith.constant dense<0.000000e+00> : vector<8xf32>
    %10 = vector.multi_reduction <add>, %7, %cst_6 [1] : vector<8x128xf32> to vector<8xf32>
    %11 = vector.shape_cast %10 : vector<8xf32> to vector<8x1xf32>
    %cst_7 = arith.constant 1.280000e+02 : f32
    %12 = vector.broadcast %cst_7 : f32 to vector<8x1xf32>
    %13 = arith.divf %11, %12 : vector<8x1xf32>
    %14 = vector.broadcast %13 : vector<8x1xf32> to vector<8x128xf32>
    %15 = arith.subf %7, %14 : vector<8x128xf32>
    %16 = arith.mulf %15, %15 : vector<8x128xf32>
    %cst_8 = arith.constant dense<0.000000e+00> : vector<8xf32>
    %17 = vector.multi_reduction <add>, %16, %cst_8 [1] : vector<8x128xf32> to vector<8xf32>
    %18 = vector.shape_cast %17 : vector<8xf32> to vector<8x1xf32>
    %cst_9 = arith.constant 1.280000e+02 : f32
    %19 = vector.broadcast %cst_9 : f32 to vector<8x1xf32>
    %20 = arith.divf %18, %19 : vector<8x1xf32>
    %21 = vector.broadcast %13 : vector<8x1xf32> to vector<8x128xf32>
    %22 = arith.subf %7, %21 : vector<8x128xf32>
    %cst_10 = arith.constant 9.99999974E-6 : f32
    %23 = vector.broadcast %cst_10 : f32 to vector<8x1xf32>
    %24 = arith.addf %20, %23 : vector<8x1xf32>
    %25 = math.rsqrt %24 : vector<8x1xf32>
    %26 = vector.broadcast %25 : vector<8x1xf32> to vector<8x128xf32>
    %27 = arith.mulf %22, %26 : vector<8x128xf32>
    %28 = vector.broadcast %8 : vector<1x128xf32> to vector<8x128xf32>
    %29 = arith.mulf %27, %28 : vector<8x128xf32>
    %30 = vector.broadcast %9 : vector<1x128xf32> to vector<8x128xf32>
    %31 = arith.addf %29, %30 : vector<8x128xf32>
    %cst_11 = arith.constant 0.000000e+00 : f32
    %32 = vector.broadcast %cst_11 : f32 to vector<8x128xf32>
    %33 = arith.maximumf %31, %32 : vector<8x128xf32>
    %34 = arith.truncf %33 : vector<8x128xf32> to vector<8x128xbf16>
    %c1 = arith.constant 1 : index
    %c0_12 = arith.constant 0 : index
    %c0_13 = arith.constant 0 : index
    %35 = vector.load %arg2[%c1, %c0_12, %c0_13] : memref<6x128x128xbf16, #tpu.memory_space<vmem>>, vector<1x128x128xbf16>
    %36 = vector.shape_cast %35 : vector<1x128x128xbf16> to vector<128x128xbf16>
    %cst_14 = arith.constant dense<0.000000e+00> : vector<8x128xf32>
    %37 = tpu.matmul %34, %36, %cst_14 {dimension_numbers = #tpu.dot_dimension_numbers<[1], [0], [0], [1], [0, 0, 1, 1], [], []>} : vector<8x128xbf16>, vector<128x128xbf16>, vector<8x128xf32> -> vector<8x128xf32>
    %38 = vector.extract_strided_slice %1 {offsets = [3, 0], sizes = [1, 128], strides = [1, 1]} : vector<16x128xf32> to vector<1x128xf32>
    %39 = vector.broadcast %38 : vector<1x128xf32> to vector<8x128xf32>
    %40 = arith.addf %37, %39 : vector<8x128xf32>
    %41 = vector.extract_strided_slice %1 {offsets = [4, 0], sizes = [1, 128], strides = [1, 1]} : vector<16x128xf32> to vector<1x128xf32>
    %42 = vector.extract_strided_slice %1 {offsets = [5, 0], sizes = [1, 128], strides = [1, 1]} : vector<16x128xf32> to vector<1x128xf32>
    %cst_15 = arith.constant dense<0.000000e+00> : vector<8xf32>
    %43 = vector.multi_reduction <add>, %40, %cst_15 [1] : vector<8x128xf32> to vector<8xf32>
    %44 = vector.shape_cast %43 : vector<8xf32> to vector<8x1xf32>
    %cst_16 = arith.constant 1.280000e+02 : f32
    %45 = vector.broadcast %cst_16 : f32 to vector<8x1xf32>
    %46 = arith.divf %44, %45 : vector<8x1xf32>
    %47 = vector.broadcast %46 : vector<8x1xf32> to vector<8x128xf32>
    %48 = arith.subf %40, %47 : vector<8x128xf32>
    %49 = arith.mulf %48, %48 : vector<8x128xf32>
    %cst_17 = arith.constant dense<0.000000e+00> : vector<8xf32>
    %50 = vector.multi_reduction <add>, %49, %cst_17 [1] : vector<8x128xf32> to vector<8xf32>
    %51 = vector.shape_cast %50 : vector<8xf32> to vector<8x1xf32>
    %cst_18 = arith.constant 1.280000e+02 : f32
    %52 = vector.broadcast %cst_18 : f32 to vector<8x1xf32>
    %53 = arith.divf %51, %52 : vector<8x1xf32>
    %54 = vector.broadcast %46 : vector<8x1xf32> to vector<8x128xf32>
    %55 = arith.subf %40, %54 : vector<8x128xf32>
    %cst_19 = arith.constant 9.99999974E-6 : f32
    %56 = vector.broadcast %cst_19 : f32 to vector<8x1xf32>
    %57 = arith.addf %53, %56 : vector<8x1xf32>
    %58 = math.rsqrt %57 : vector<8x1xf32>
    %59 = vector.broadcast %58 : vector<8x1xf32> to vector<8x128xf32>
    %60 = arith.mulf %55, %59 : vector<8x128xf32>
    %61 = vector.broadcast %41 : vector<1x128xf32> to vector<8x128xf32>
    %62 = arith.mulf %60, %61 : vector<8x128xf32>
    %63 = vector.broadcast %42 : vector<1x128xf32> to vector<8x128xf32>
    %64 = arith.addf %62, %63 : vector<8x128xf32>
    %cst_20 = arith.constant 0.000000e+00 : f32
    %65 = vector.broadcast %cst_20 : f32 to vector<8x128xf32>
    %66 = arith.maximumf %64, %65 : vector<8x128xf32>
    %67 = arith.truncf %66 : vector<8x128xf32> to vector<8x128xbf16>
    %c2 = arith.constant 2 : index
    %c0_21 = arith.constant 0 : index
    %c0_22 = arith.constant 0 : index
    %68 = vector.load %arg2[%c2, %c0_21, %c0_22] : memref<6x128x128xbf16, #tpu.memory_space<vmem>>, vector<1x128x128xbf16>
    %69 = vector.shape_cast %68 : vector<1x128x128xbf16> to vector<128x128xbf16>
    %cst_23 = arith.constant dense<0.000000e+00> : vector<8x128xf32>
    %70 = tpu.matmul %67, %69, %cst_23 {dimension_numbers = #tpu.dot_dimension_numbers<[1], [0], [0], [1], [0, 0, 1, 1], [], []>} : vector<8x128xbf16>, vector<128x128xbf16>, vector<8x128xf32> -> vector<8x128xf32>
    %71 = vector.extract_strided_slice %1 {offsets = [12, 0], sizes = [1, 128], strides = [1, 1]} : vector<16x128xf32> to vector<1x128xf32>
    %72 = vector.broadcast %71 : vector<1x128xf32> to vector<8x128xf32>
    %73 = arith.addf %70, %72 : vector<8x128xf32>
    %74 = vector.extract_strided_slice %73 {offsets = [0, 0], sizes = [8, 4], strides = [1, 1]} : vector<8x128xf32> to vector<8x4xf32>
    %75 = vector.extract_strided_slice %73 {offsets = [0, 4], sizes = [8, 4], strides = [1, 1]} : vector<8x128xf32> to vector<8x4xf32>
    %76 = math.exp %75 : vector<8x4xf32>
    %77 = vector.extract_strided_slice %0 {offsets = [0, 64], sizes = [8, 4], strides = [1, 1]} : vector<8x128xbf16> to vector<8x4xbf16>
    %78 = arith.extf %77 : vector<8x4xbf16> to vector<8x4xf32>
    %79 = arith.mulf %76, %78 : vector<8x4xf32>
    %80 = arith.addf %74, %79 : vector<8x4xf32>
    %c3 = arith.constant 3 : index
    %c0_24 = arith.constant 0 : index
    %c0_25 = arith.constant 0 : index
    %81 = vector.load %arg2[%c3, %c0_24, %c0_25] : memref<6x128x128xbf16, #tpu.memory_space<vmem>>, vector<1x128x128xbf16>
    %82 = vector.shape_cast %81 : vector<1x128x128xbf16> to vector<128x128xbf16>
    %cst_26 = arith.constant dense<0.000000e+00> : vector<8x128xf32>
    %83 = tpu.matmul %0, %82, %cst_26 {dimension_numbers = #tpu.dot_dimension_numbers<[1], [0], [0], [1], [0, 0, 1, 1], [], []>} : vector<8x128xbf16>, vector<128x128xbf16>, vector<8x128xf32> -> vector<8x128xf32>
    %84 = arith.truncf %80 : vector<8x4xf32> to vector<8x4xbf16>
    %c0_27 = arith.constant 0 : index
    %c0_28 = arith.constant 0 : index
    %85 = vector.load %arg3[%c0_27, %c0_28] : memref<4x128xbf16, #tpu.memory_space<vmem>>, vector<4x128xbf16>
    %cst_29 = arith.constant dense<0.000000e+00> : vector<8x128xf32>
    %86 = tpu.matmul %84, %85, %cst_29 {dimension_numbers = #tpu.dot_dimension_numbers<[1], [0], [0], [1], [0, 0, 1, 1], [], []>} : vector<8x4xbf16>, vector<4x128xbf16>, vector<8x128xf32> -> vector<8x128xf32>
    %87 = arith.addf %83, %86 : vector<8x128xf32>
    %88 = vector.extract_strided_slice %1 {offsets = [6, 0], sizes = [1, 128], strides = [1, 1]} : vector<16x128xf32> to vector<1x128xf32>
    %89 = vector.broadcast %88 : vector<1x128xf32> to vector<8x128xf32>
    %90 = arith.addf %87, %89 : vector<8x128xf32>
    %91 = vector.extract_strided_slice %1 {offsets = [7, 0], sizes = [1, 128], strides = [1, 1]} : vector<16x128xf32> to vector<1x128xf32>
    %92 = vector.extract_strided_slice %1 {offsets = [8, 0], sizes = [1, 128], strides = [1, 1]} : vector<16x128xf32> to vector<1x128xf32>
    %cst_30 = arith.constant dense<0.000000e+00> : vector<8xf32>
    %93 = vector.multi_reduction <add>, %90, %cst_30 [1] : vector<8x128xf32> to vector<8xf32>
    %94 = vector.shape_cast %93 : vector<8xf32> to vector<8x1xf32>
    %cst_31 = arith.constant 1.280000e+02 : f32
    %95 = vector.broadcast %cst_31 : f32 to vector<8x1xf32>
    %96 = arith.divf %94, %95 : vector<8x1xf32>
    %97 = vector.broadcast %96 : vector<8x1xf32> to vector<8x128xf32>
    %98 = arith.subf %90, %97 : vector<8x128xf32>
    %99 = arith.mulf %98, %98 : vector<8x128xf32>
    %cst_32 = arith.constant dense<0.000000e+00> : vector<8xf32>
    %100 = vector.multi_reduction <add>, %99, %cst_32 [1] : vector<8x128xf32> to vector<8xf32>
    %101 = vector.shape_cast %100 : vector<8xf32> to vector<8x1xf32>
    %cst_33 = arith.constant 1.280000e+02 : f32
    %102 = vector.broadcast %cst_33 : f32 to vector<8x1xf32>
    %103 = arith.divf %101, %102 : vector<8x1xf32>
    %104 = vector.broadcast %96 : vector<8x1xf32> to vector<8x128xf32>
    %105 = arith.subf %90, %104 : vector<8x128xf32>
    %cst_34 = arith.constant 9.99999974E-6 : f32
    %106 = vector.broadcast %cst_34 : f32 to vector<8x1xf32>
    %107 = arith.addf %103, %106 : vector<8x1xf32>
    %108 = math.rsqrt %107 : vector<8x1xf32>
    %109 = vector.broadcast %108 : vector<8x1xf32> to vector<8x128xf32>
    %110 = arith.mulf %105, %109 : vector<8x128xf32>
    %111 = vector.broadcast %91 : vector<1x128xf32> to vector<8x128xf32>
    %112 = arith.mulf %110, %111 : vector<8x128xf32>
    %113 = vector.broadcast %92 : vector<1x128xf32> to vector<8x128xf32>
    %114 = arith.addf %112, %113 : vector<8x128xf32>
    %cst_35 = arith.constant 0.000000e+00 : f32
    %115 = vector.broadcast %cst_35 : f32 to vector<8x128xf32>
    %116 = arith.maximumf %114, %115 : vector<8x128xf32>
    %117 = arith.truncf %116 : vector<8x128xf32> to vector<8x128xbf16>
    %c4 = arith.constant 4 : index
    %c0_36 = arith.constant 0 : index
    %c0_37 = arith.constant 0 : index
    %118 = vector.load %arg2[%c4, %c0_36, %c0_37] : memref<6x128x128xbf16, #tpu.memory_space<vmem>>, vector<1x128x128xbf16>
    %119 = vector.shape_cast %118 : vector<1x128x128xbf16> to vector<128x128xbf16>
    %cst_38 = arith.constant dense<0.000000e+00> : vector<8x128xf32>
    %120 = tpu.matmul %117, %119, %cst_38 {dimension_numbers = #tpu.dot_dimension_numbers<[1], [0], [0], [1], [0, 0, 1, 1], [], []>} : vector<8x128xbf16>, vector<128x128xbf16>, vector<8x128xf32> -> vector<8x128xf32>
    %121 = vector.extract_strided_slice %1 {offsets = [9, 0], sizes = [1, 128], strides = [1, 1]} : vector<16x128xf32> to vector<1x128xf32>
    %122 = vector.broadcast %121 : vector<1x128xf32> to vector<8x128xf32>
    %123 = arith.addf %120, %122 : vector<8x128xf32>
    %124 = vector.extract_strided_slice %1 {offsets = [10, 0], sizes = [1, 128], strides = [1, 1]} : vector<16x128xf32> to vector<1x128xf32>
    %125 = vector.extract_strided_slice %1 {offsets = [11, 0], sizes = [1, 128], strides = [1, 1]} : vector<16x128xf32> to vector<1x128xf32>
    %cst_39 = arith.constant dense<0.000000e+00> : vector<8xf32>
    %126 = vector.multi_reduction <add>, %123, %cst_39 [1] : vector<8x128xf32> to vector<8xf32>
    %127 = vector.shape_cast %126 : vector<8xf32> to vector<8x1xf32>
    %cst_40 = arith.constant 1.280000e+02 : f32
    %128 = vector.broadcast %cst_40 : f32 to vector<8x1xf32>
    %129 = arith.divf %127, %128 : vector<8x1xf32>
    %130 = vector.broadcast %129 : vector<8x1xf32> to vector<8x128xf32>
    %131 = arith.subf %123, %130 : vector<8x128xf32>
    %132 = arith.mulf %131, %131 : vector<8x128xf32>
    %cst_41 = arith.constant dense<0.000000e+00> : vector<8xf32>
    %133 = vector.multi_reduction <add>, %132, %cst_41 [1] : vector<8x128xf32> to vector<8xf32>
    %134 = vector.shape_cast %133 : vector<8xf32> to vector<8x1xf32>
    %cst_42 = arith.constant 1.280000e+02 : f32
    %135 = vector.broadcast %cst_42 : f32 to vector<8x1xf32>
    %136 = arith.divf %134, %135 : vector<8x1xf32>
    %137 = vector.broadcast %129 : vector<8x1xf32> to vector<8x128xf32>
    %138 = arith.subf %123, %137 : vector<8x128xf32>
    %cst_43 = arith.constant 9.99999974E-6 : f32
    %139 = vector.broadcast %cst_43 : f32 to vector<8x1xf32>
    %140 = arith.addf %136, %139 : vector<8x1xf32>
    %141 = math.rsqrt %140 : vector<8x1xf32>
    %142 = vector.broadcast %141 : vector<8x1xf32> to vector<8x128xf32>
    %143 = arith.mulf %138, %142 : vector<8x128xf32>
    %144 = vector.broadcast %124 : vector<1x128xf32> to vector<8x128xf32>
    %145 = arith.mulf %143, %144 : vector<8x128xf32>
    %146 = vector.broadcast %125 : vector<1x128xf32> to vector<8x128xf32>
    %147 = arith.addf %145, %146 : vector<8x128xf32>
    %cst_44 = arith.constant 0.000000e+00 : f32
    %148 = vector.broadcast %cst_44 : f32 to vector<8x128xf32>
    %149 = arith.maximumf %147, %148 : vector<8x128xf32>
    %150 = arith.truncf %149 : vector<8x128xf32> to vector<8x128xbf16>
    %c5 = arith.constant 5 : index
    %c0_45 = arith.constant 0 : index
    %c0_46 = arith.constant 0 : index
    %151 = vector.load %arg2[%c5, %c0_45, %c0_46] : memref<6x128x128xbf16, #tpu.memory_space<vmem>>, vector<1x128x128xbf16>
    %152 = vector.shape_cast %151 : vector<1x128x128xbf16> to vector<128x128xbf16>
    %cst_47 = arith.constant dense<0.000000e+00> : vector<8x128xf32>
    %153 = tpu.matmul %150, %152, %cst_47 {dimension_numbers = #tpu.dot_dimension_numbers<[1], [0], [0], [1], [0, 0, 1, 1], [], []>} : vector<8x128xbf16>, vector<128x128xbf16>, vector<8x128xf32> -> vector<8x128xf32>
    %154 = vector.extract_strided_slice %1 {offsets = [13, 0], sizes = [1, 128], strides = [1, 1]} : vector<16x128xf32> to vector<1x128xf32>
    %155 = vector.broadcast %154 : vector<1x128xf32> to vector<8x128xf32>
    %156 = arith.addf %153, %155 : vector<8x128xf32>
    %157 = tpu.iota {dimensions = array<i32: 1>} : vector<8x128xi32>
    %c32_i32 = arith.constant 32 : i32
    %158 = vector.broadcast %c32_i32 : i32 to vector<8x128xi32>
    %159 = arith.cmpi slt, %157, %158 : vector<8x128xi32>
    %160 = math.exp %156 : vector<8x128xf32>
    %161 = arith.select %159, %156, %160 : vector<8x128xi1>, vector<8x128xf32>
    %c0_48 = arith.constant 0 : index
    %c0_49 = arith.constant 0 : index
    %162 = vector.load %arg5[%c0_48, %c0_49] : memref<8x128xf32, #tpu.memory_space<vmem>>, vector<8x128xf32>
    tpu.vector_store %arg5[%c0_48, %c0_49], %161 {strides = array<i32>} : memref<8x128xf32, #tpu.memory_space<vmem>>, vector<8x128xf32>,
    return
  }
  func.func @transform_0(%arg0: i32) -> (i32, i32) {
    %c0_i32 = arith.constant 0 : i32
    %c0_i32_0 = arith.constant 0 : i32
    return %arg0, %c0_i32 : i32, i32
  }
  func.func @transform_1(%arg0: i32) -> (i32, i32, i32) {
    %c0_i32 = arith.constant 0 : i32
    %c0_i32_0 = arith.constant 0 : i32
    %c0_i32_1 = arith.constant 0 : i32
    %c0_i32_2 = arith.constant 0 : i32
    return %c0_i32, %c0_i32_0, %c0_i32_1 : i32, i32, i32
  }
  func.func @transform_2(%arg0: i32) -> (i32, i32) {
    %c0_i32 = arith.constant 0 : i32
    %c0_i32_0 = arith.constant 0 : i32
    %c0_i32_1 = arith.constant 0 : i32
    return %c0_i32, %c0_i32_0 : i32, i32
  }
  func.func @transform_3(%arg0: i32) -> (i32, i32) {
    %c0_i32 = arith.constant 0 : i32
    %c0_i32_0 = arith.constant 0 : i32
    %c0_i32_1 = arith.constant 0 : i32
    return %c0_i32, %c0_i32_0 : i32, i32
  }
  func.func @transform_4(%arg0: i32) -> (i32, i32) {
    %c0_i32 = arith.constant 0 : i32
    %c0_i32_0 = arith.constant 0 : i32
    return %arg0, %c0_i32 : i32, i32
  }
}

</mosaic_0001>

<llo_original>
// kernel: cvae_forward.1
$region0: #{cvae_forward.1}
  #allocation0 [shape = 'u32[]', space=smem, size = 0x4, offset = 0x4, fixed_abs, tag = 'smem constant byte address 0x4 - core index']
  #allocation1 [shape = 'u32[72,128]{1,0:T(1,128)}', space=vmem, size = 0x9000, scoped, tag = 'internal scratch']
  %s0 = inlined_call_operand.vmem [shape: bf16[8,128], index: 0, kind: input, shape index: {}]
  %s1 = inlined_call_operand.hbm [shape: bf16[6,128,128], index: 1, kind: input, shape index: {}]
  %s2 = inlined_call_operand.vmem [shape: bf16[4,128], index: 2, kind: input, shape index: {}]
  %s3 = inlined_call_operand.vmem [shape: f32[16,128], index: 3, kind: input, shape index: {}]
  %s4 = inlined_call_operand.vmem [shape: f32[8,128], index: 4, kind: output, shape index: {}]
  %s5 = sld [smem:[#allocation0]]
  $region30: #{cvae_forward.1} parent=0
    _
  %s7 = ssub.s32 1, %s5
  %s8 = scalar_select 0, %s7, %s5
  $region1: #{cvae_forward.1} parent=0
    #allocation2 [shape = 'u8[196608]{0}', space=vmem, size = 0x30000, scoped, tag = 'input window, operand 1, single buffered']
    #allocation3 [shape = 's32[1]{0}', space=sflag, size = 0x4, scoped, tag = 'scoped memory for cvae_forward.1']
    %9 = vsyncpa [#allocation3], 0
    // Predicated region
    $region2: #{cvae_forward.1} parent=1 // pred_check
      _
    $region3: #{cvae_forward.1} parent=1 // pred_check_branch
      %11 = sbr.rel (0) target = $region5
    $region4: #{cvae_forward.1} parent=1 // pred_region
      _
    $region5: #{cvae_forward.1} parent=1 // pred_fallthru
      _
    // Predicated region
    $region6: #{cvae_forward.1} parent=1 // pred_check
      _
    $region7: #{cvae_forward.1} parent=1 // pred_check_branch
      %13 = sbr.rel (0) target = $region9
    $region8: #{cvae_forward.1} parent=1 // pred_region
      %15 = vsyncadd [#allocation3], 0
      %s16 = sshll.u32 %s1, 4
      %s17 = int_to_ptr.hbm [resolvable:$true] %s16
      %s18 = sshll.u32 [#allocation2], 4
      %s19 = int_to_ptr.vmem [resolvable:$true] %s18
      %24 = dma.hbm_to_vmem [thread:$0]  %s17, 6144, %s19, [#allocation3], 64, 64, 4
    $region9: #{cvae_forward.1} parent=1 // pred_fallthru
      _
    // Predicated region
    $region10: #{cvae_forward.1} parent=1 // pred_check
      _
    $region11: #{cvae_forward.1} parent=1 // pred_check_branch
      %26 = sbr.rel (0) target = $region13
    $region12: #{cvae_forward.1} parent=1 // pred_region
      _
    $region13: #{cvae_forward.1} parent=1 // pred_fallthru
      _
    // Predicated region
    $region14: #{cvae_forward.1} parent=1 // pred_check
      _
    $region15: #{cvae_forward.1} parent=1 // pred_check_branch
      %28 = sbr.rel (0) target = $region17
    $region16: #{cvae_forward.1} parent=1 // pred_region
      _
    $region17: #{cvae_forward.1} parent=1 // pred_fallthru
      _
    // Predicated region
    $region18: #{cvae_forward.1} parent=1 // pred_check
      _
    $region19: #{cvae_forward.1} parent=1 // pred_check_branch
      %30 = sbr.rel (0) target = $region21
    $region20: #{cvae_forward.1} parent=1 // pred_region
      %32 = dma.done [#allocation3], 6144
    $region21: #{cvae_forward.1} parent=1 // pred_fallthru
      _
    %v34 = vld [vmem:[%s0] sm:$0xf]
    %v35 = vld [vmem:[%s3] sm:$0xff]
    %v36 = vld [vmem:[%s3 + $0x8] sm:$0xff]
    %v37 = vld [vmem:[#allocation2] sm:$0xf]
    %v38 = vld [vmem:[#allocation2 + $0x4] sm:$0xf]
    %v39 = vld [vmem:[#allocation2 + $0x8] sm:$0xf]
    %v40 = vld [vmem:[#allocation2 + $0xc] sm:$0xf]
    %v41 = vld [vmem:[#allocation2 + $0x10] sm:$0xf]
    %v42 = vld [vmem:[#allocation2 + $0x14] sm:$0xf]
    %v43 = vld [vmem:[#allocation2 + $0x18] sm:$0xf]
    %v44 = vld [vmem:[#allocation2 + $0x1c] sm:$0xf]
    %v45 = vld [vmem:[#allocation2 + $0x20] sm:$0xf]
    %v46 = vld [vmem:[#allocation2 + $0x24] sm:$0xf]
    %v47 = vld [vmem:[#allocation2 + $0x28] sm:$0xf]
    %v48 = vld [vmem:[#allocation2 + $0x2c] sm:$0xf]
    %v49 = vld [vmem:[#allocation2 + $0x30] sm:$0xf]
    %v50 = vld [vmem:[#allocation2 + $0x34] sm:$0xf]
    %v51 = vld [vmem:[#allocation2 + $0x38] sm:$0xf]
    %v52 = vld [vmem:[#allocation2 + $0x3c] sm:$0xf]
    %v53 = vperm.slane %v35, 0
    %v70 = vunpack.c.l.b16 %v37
    %v71 = vunpack.c.l.b16 %v38
    %v72 = vunpack.c.l.b16 %v39
    %v73 = vunpack.c.l.b16 %v40
    %v74 = vunpack.c.l.b16 %v41
    %v75 = vunpack.c.l.b16 %v42
    %v76 = vunpack.c.l.b16 %v43
    %v77 = vunpack.c.l.b16 %v44
    %v78 = vunpack.c.l.b16 %v45
    %v79 = vunpack.c.l.b16 %v46
    %v80 = vunpack.c.l.b16 %v47
    %v81 = vunpack.c.l.b16 %v48
    %v82 = vunpack.c.l.b16 %v49
    %v83 = vunpack.c.l.b16 %v50
    %v84 = vunpack.c.l.b16 %v51
    %v85 = vunpack.c.l.b16 %v52
    %v86 = vpack.c.b16 %v71, %v70
    %v87 = vpack.c.b16 %v73, %v72
    %v88 = vpack.c.b16 %v75, %v74
    %v89 = vpack.c.b16 %v77, %v76
    %v90 = vpack.c.b16 %v79, %v78
    %v91 = vpack.c.b16 %v81, %v80
    %v92 = vpack.c.b16 %v83, %v82
    %v93 = vpack.c.b16 %v85, %v84
    %102 = vmatpush.bf16.msra.mxu0 %v93
    %103 = vmatpush.bf16.msra.mxu0 %v92
    %104 = vmatpush.bf16.msra.mxu0 %v91
    %105 = vmatpush.bf16.msra.mxu0 %v90
    %106 = vmatpush.bf16.msra.mxu0 %v89
    %107 = vmatpush.bf16.msra.mxu0 %v88
    %108 = vmatpush.bf16.msra.mxu0 %v87
    %109 = vmatpush.bf16.msra.mxu0 %v86
    %110 = vmatmul.bf16.gmra.mxu0 %v34
    %v111 = vpop.f32.mrf.mxu0
    %v112 = vadd.f32 %v53, %v111
    %v113 = vpop.f32.mrf.mxu0
    %114 = vdwg.mxu0
    %115 = vadd.xlane.f32.xlu0 %v112
    %v116 = vpop.xlane.xlu0 %115
    %v117 = vrcp.pop 128.0
    %v118 = vmul.f32 128.0, %v117
    %v119 = vsub.f32 1.0, %v118
    %v120 = vmul.f32 %v117, %v119
    %v121 = vadd.f32 %v117, %v120
    %vm122 = vweird.f32 %v117
    %v123 = vsel %vm122, %v117, %v121
    %v124 = vmul.f32 %v116, %v123
    %v125 = vsub.f32 %v112, %v124
    %v126 = vmul.f32 %v125, %v125
    %127 = vadd.xlane.f32.xlu0 %v126
    %v128 = vpop.xlane.xlu0 %127
    %v129 = vmul.f32 %v128, %v123
    %v130 = vadd.f32 %v129, 1e-05
    %v131 = vrsqrt.pop %v130
    %v132 = vmul.f32 %v131, %v130
    %v133 = vmul.f32 %v132, %v131
    %v134 = vmul.f32 0.5, %v133
    %v135 = vsub.f32 1.5, %v134
    %v136 = vmul.f32 %v131, %v135
    %vm137 = vweird.f32 %v130
    %vm138 = vweird.f32 %v131
    %vm139 = vmor %vm137, %vm138
    %v140 = vsel %vm139, %v131, %v136
    %v141 = vmul.f32 %v125, %v140
    %v142 = vperm.slane %v35, 1
    %v143 = vmul.f32 %v141, %v142
    %v144 = vperm.slane %v35, 2
    %v145 = vadd.f32 %v143, %v144
    %v146 = vmax.f32 %v145, 0.0
    %v147 = vpack.c.bf16 %v146, %v146
    %s148 = scalar_lea.vmem [#allocation2], 64
    %v149 = vld [vmem:[%s148] sm:$0xf]
    %v150 = vld [vmem:[%s148 + $0x4] sm:$0xf]
    %v151 = vld [vmem:[%s148 + $0x8] sm:$0xf]
    %v152 = vld [vmem:[%s148 + $0xc] sm:$0xf]
    %v153 = vld [vmem:[%s148 + $0x10] sm:$0xf]
    %v154 = vld [vmem:[%s148 + $0x14] sm:$0xf]
    %v155 = vld [vmem:[%s148 + $0x18] sm:$0xf]
    %v156 = vld [vmem:[%s148 + $0x1c] sm:$0xf]
    %v157 = vld [vmem:[%s148 + $0x20] sm:$0xf]
    %v158 = vld [vmem:[%s148 + $0x24] sm:$0xf]
    %v159 = vld [vmem:[%s148 + $0x28] sm:$0xf]
    %v160 = vld [vmem:[%s148 + $0x2c] sm:$0xf]
    %v161 = vld [vmem:[%s148 + $0x30] sm:$0xf]
    %v162 = vld [vmem:[%s148 + $0x34] sm:$0xf]
    %v163 = vld [vmem:[%s148 + $0x38] sm:$0xf]
    %v164 = vld [vmem:[%s148 + $0x3c] sm:$0xf]
    %v165 = vperm.slane %v35, 3
    %v182 = vunpack.c.l.b16 %v149
    %v183 = vunpack.c.l.b16 %v150
    %v184 = vunpack.c.l.b16 %v151
    %v185 = vunpack.c.l.b16 %v152
    %v186 = vunpack.c.l.b16 %v153
    %v187 = vunpack.c.l.b16 %v154
    %v188 = vunpack.c.l.b16 %v155
    %v189 = vunpack.c.l.b16 %v156
    %v190 = vunpack.c.l.b16 %v157
    %v191 = vunpack.c.l.b16 %v158
    %v192 = vunpack.c.l.b16 %v159
    %v193 = vunpack.c.l.b16 %v160
    %v194 = vunpack.c.l.b16 %v161
    %v195 = vunpack.c.l.b16 %v162
    %v196 = vunpack.c.l.b16 %v163
    %v197 = vunpack.c.l.b16 %v164
    %v198 = vpack.c.b16 %v183, %v182
    %v199 = vpack.c.b16 %v185, %v184
    %v200 = vpack.c.b16 %v187, %v186
    %v201 = vpack.c.b16 %v189, %v188
    %v202 = vpack.c.b16 %v191, %v190
    %v203 = vpack.c.b16 %v193, %v192
    %v204 = vpack.c.b16 %v195, %v194
    %v205 = vpack.c.b16 %v197, %v196
    %214 = vmatpush.bf16.msra.mxu0 %v205
    %215 = vmatpush.bf16.msra.mxu0 %v204
    %216 = vmatpush.bf16.msra.mxu0 %v203
    %217 = vmatpush.bf16.msra.mxu0 %v202
    %218 = vmatpush.bf16.msra.mxu0 %v201
    %219 = vmatpush.bf16.msra.mxu0 %v200
    %220 = vmatpush.bf16.msra.mxu0 %v199
    %221 = vmatpush.bf16.msra.mxu0 %v198
    %222 = vmatmul.bf16.gmra.mxu0 %v147
    %v223 = vpop.f32.mrf.mxu0
    %v224 = vadd.f32 %v165, %v223
    %v225 = vpop.f32.mrf.mxu0
    %226 = vdwg.mxu0
    %227 = vadd.xlane.f32.xlu0 %v224
    %v228 = vpop.xlane.xlu0 %227
    %v229 = vmul.f32 %v228, %v123
    %v230 = vsub.f32 %v224, %v229
    %v231 = vmul.f32 %v230, %v230
    %232 = vadd.xlane.f32.xlu0 %v231
    %v233 = vpop.xlane.xlu0 %232
    %v234 = vmul.f32 %v233, %v123
    %v235 = vadd.f32 %v234, 1e-05
    %v236 = vrsqrt.pop %v235
    %v237 = vmul.f32 %v236, %v235
    %v238 = vmul.f32 %v237, %v236
    %v239 = vmul.f32 0.5, %v238
    %v240 = vsub.f32 1.5, %v239
    %v241 = vmul.f32 %v236, %v240
    %vm242 = vweird.f32 %v235
    %vm243 = vweird.f32 %v236
    %vm244 = vmor %vm242, %vm243
    %v245 = vsel %vm244, %v236, %v241
    %v246 = vmul.f32 %v230, %v245
    %v247 = vperm.slane %v35, 4
    %v248 = vmul.f32 %v246, %v247
    %v249 = vperm.slane %v35, 5
    %v250 = vadd.f32 %v248, %v249
    %v251 = vmax.f32 %v250, 0.0
    %v252 = vpack.c.bf16 %v251, %v251
    %s253 = scalar_lea.vmem [#allocation2], 128
    %v254 = vld [vmem:[%s253] sm:$0xf]
    %v255 = vld [vmem:[%s253 + $0x4] sm:$0xf]
    %v256 = vld [vmem:[%s253 + $0x8] sm:$0xf]
    %v257 = vld [vmem:[%s253 + $0xc] sm:$0xf]
    %v258 = vld [vmem:[%s253 + $0x10] sm:$0xf]
    %v259 = vld [vmem:[%s253 + $0x14] sm:$0xf]
    %v260 = vld [vmem:[%s253 + $0x18] sm:$0xf]
    %v261 = vld [vmem:[%s253 + $0x1c] sm:$0xf]
    %v262 = vld [vmem:[%s253 + $0x20] sm:$0xf]
    %v263 = vld [vmem:[%s253 + $0x24] sm:$0xf]
    %v264 = vld [vmem:[%s253 + $0x28] sm:$0xf]
    %v265 = vld [vmem:[%s253 + $0x2c] sm:$0xf]
    %v266 = vld [vmem:[%s253 + $0x30] sm:$0xf]
    %v267 = vld [vmem:[%s253 + $0x34] sm:$0xf]
    %v268 = vld [vmem:[%s253 + $0x38] sm:$0xf]
    %v269 = vld [vmem:[%s253 + $0x3c] sm:$0xf]
    %v270 = vperm.slane %v36, 4
    %v287 = vunpack.c.l.b16 %v254
    %v288 = vunpack.c.l.b16 %v255
    %v289 = vunpack.c.l.b16 %v256
    %v290 = vunpack.c.l.b16 %v257
    %v291 = vunpack.c.l.b16 %v258
    %v292 = vunpack.c.l.b16 %v259
    %v293 = vunpack.c.l.b16 %v260
    %v294 = vunpack.c.l.b16 %v261
    %v295 = vunpack.c.l.b16 %v262
    %v296 = vunpack.c.l.b16 %v263
    %v297 = vunpack.c.l.b16 %v264
    %v298 = vunpack.c.l.b16 %v265
    %v299 = vunpack.c.l.b16 %v266
    %v300 = vunpack.c.l.b16 %v267
    %v301 = vunpack.c.l.b16 %v268
    %v302 = vunpack.c.l.b16 %v269
    %v303 = vpack.c.b16 %v288, %v287
    %v304 = vpack.c.b16 %v290, %v289
    %v305 = vpack.c.b16 %v292, %v291
    %v306 = vpack.c.b16 %v294, %v293
    %v307 = vpack.c.b16 %v296, %v295
    %v308 = vpack.c.b16 %v298, %v297
    %v309 = vpack.c.b16 %v300, %v299
    %v310 = vpack.c.b16 %v302, %v301
    %319 = vmatpush.bf16.msra.mxu0 %v310
    %320 = vmatpush.bf16.msra.mxu0 %v309
    %321 = vmatpush.bf16.msra.mxu0 %v308
    %322 = vmatpush.bf16.msra.mxu0 %v307
    %323 = vmatpush.bf16.msra.mxu0 %v306
    %324 = vmatpush.bf16.msra.mxu0 %v305
    %325 = vmatpush.bf16.msra.mxu0 %v304
    %326 = vmatpush.bf16.msra.mxu0 %v303
    %327 = vmatmul.bf16.gmra.mxu0 %v252
    %v328 = vpop.f32.mrf.mxu0
    %v329 = vadd.f32 %v270, %v328
    %v330 = vpop.f32.mrf.mxu0
    %331 = vdwg.mxu0
    %v332 = vmul.f32 %v329, 1.442695
    %v333 = vpow.pop %v332
    %v334 = vunpack.c.l.bf16 %v34
    %336 = vrot.lane.b32.xlu0 %v334, 68
    %v337 = vpop.permute.xlu0 %336
    %v339 = vmul.f32 %v333, %v337
    %341 = vrot.lane.b32.xlu0 %v339, 124
    %v342 = vpop.permute.xlu0 %341
    %v344 = vadd.f32 %v329, %v342
    %s345 = scalar_lea.vmem [#allocation2], 192
    %v346 = vld [vmem:[%s345] sm:$0xf]
    %v347 = vld [vmem:[%s345 + $0x4] sm:$0xf]
    %v348 = vld [vmem:[%s345 + $0x8] sm:$0xf]
    %v349 = vld [vmem:[%s345 + $0xc] sm:$0xf]
    %v350 = vld [vmem:[%s345 + $0x10] sm:$0xf]
    %v351 = vld [vmem:[%s345 + $0x14] sm:$0xf]
    %v352 = vld [vmem:[%s345 + $0x18] sm:$0xf]
    %v353 = vld [vmem:[%s345 + $0x1c] sm:$0xf]
    %v354 = vld [vmem:[%s345 + $0x20] sm:$0xf]
    %v355 = vld [vmem:[%s345 + $0x24] sm:$0xf]
    %v356 = vld [vmem:[%s345 + $0x28] sm:$0xf]
    %v357 = vld [vmem:[%s345 + $0x2c] sm:$0xf]
    %v358 = vld [vmem:[%s345 + $0x30] sm:$0xf]
    %v359 = vld [vmem:[%s345 + $0x34] sm:$0xf]
    %v360 = vld [vmem:[%s345 + $0x38] sm:$0xf]
    %v361 = vld [vmem:[%s345 + $0x3c] sm:$0xf]
    %v362 = vpack.c.bf16 %v344, %v344
    %v363 = vld [vmem:[%s2] sm:$0x3]
    %vm364 = vcmask 31744
    %v366 = vsel %vm364, %v362, 0
    %vm368 = vcmask 1041408
    %v370 = vsel %vm368, %v363, 0
    %372 = vmatpush.bf16.msra.mxu0 0
    %373 = vmatpush.bf16.msra.mxu0 0
    %374 = vmatpush.bf16.msra.mxu0 0
    %375 = vmatpush.bf16.msra.mxu0 0
    %376 = vmatpush.bf16.msra.mxu0 0
    %377 = vmatpush.bf16.msra.mxu0 0
    %378 = vmatpush.bf16.msra.mxu0 0
    %379 = vmatpush.bf16.msra.mxu0 %v370
    %380 = vmatmul.bf16.gmra.mxu0 %v366
    %v381 = vpop.f32.mrf.mxu0
    %v382 = vadd.f32 0.0, %v381
    %v383 = vpop.f32.mrf.mxu0
    %384 = vdwg.mxu0
    %v401 = vunpack.c.l.b16 %v346
    %v402 = vunpack.c.l.b16 %v347
    %v403 = vunpack.c.l.b16 %v348
    %v404 = vunpack.c.l.b16 %v349
    %v405 = vunpack.c.l.b16 %v350
    %v406 = vunpack.c.l.b16 %v351
    %v407 = vunpack.c.l.b16 %v352
    %v408 = vunpack.c.l.b16 %v353
    %v409 = vunpack.c.l.b16 %v354
    %v410 = vunpack.c.l.b16 %v355
    %v411 = vunpack.c.l.b16 %v356
    %v412 = vunpack.c.l.b16 %v357
    %v413 = vunpack.c.l.b16 %v358
    %v414 = vunpack.c.l.b16 %v359
    %v415 = vunpack.c.l.b16 %v360
    %v416 = vunpack.c.l.b16 %v361
    %v417 = vpack.c.b16 %v402, %v401
    %v418 = vpack.c.b16 %v404, %v403
    %v419 = vpack.c.b16 %v406, %v405
    %v420 = vpack.c.b16 %v408, %v407
    %v421 = vpack.c.b16 %v410, %v409
    %v422 = vpack.c.b16 %v412, %v411
    %v423 = vpack.c.b16 %v414, %v413
    %v424 = vpack.c.b16 %v416, %v415
    %433 = vmatpush.bf16.msra.mxu0 %v424
    %434 = vmatpush.bf16.msra.mxu0 %v423
    %435 = vmatpush.bf16.msra.mxu0 %v422
    %436 = vmatpush.bf16.msra.mxu0 %v421
    %437 = vmatpush.bf16.msra.mxu0 %v420
    %438 = vmatpush.bf16.msra.mxu0 %v419
    %439 = vmatpush.bf16.msra.mxu0 %v418
    %440 = vmatpush.bf16.msra.mxu0 %v417
    %441 = vmatmul.bf16.gmra.mxu0 %v34
    %v442 = vpop.f32.mrf.mxu0
    %v443 = vadd.f32 %v382, %v442
    %v444 = vpop.f32.mrf.mxu0
    %445 = vdwg.mxu0
    %v446 = vperm.slane %v35, 6
    %v447 = vadd.f32 %v443, %v446
    %448 = vadd.xlane.f32.xlu0 %v447
    %v449 = vpop.xlane.xlu0 %448
    %v450 = vmul.f32 %v449, %v123
    %v451 = vsub.f32 %v447, %v450
    %v452 = vmul.f32 %v451, %v451
    %453 = vadd.xlane.f32.xlu0 %v452
    %v454 = vpop.xlane.xlu0 %453
    %v455 = vmul.f32 %v454, %v123
    %v456 = vadd.f32 %v455, 1e-05
    %v457 = vrsqrt.pop %v456
    %v458 = vmul.f32 %v457, %v456
    %v459 = vmul.f32 %v458, %v457
    %v460 = vmul.f32 0.5, %v459
    %v461 = vsub.f32 1.5, %v460
    %v462 = vmul.f32 %v457, %v461
    %vm463 = vweird.f32 %v456
    %vm464 = vweird.f32 %v457
    %vm465 = vmor %vm463, %vm464
    %v466 = vsel %vm465, %v457, %v462
    %v467 = vmul.f32 %v451, %v466
    %v468 = vperm.slane %v35, 7
    %v469 = vmul.f32 %v467, %v468
    %v470 = vperm.slane %v36, 0
    %v471 = vadd.f32 %v469, %v470
    %v472 = vmax.f32 %v471, 0.0
    %v473 = vpack.c.bf16 %v472, %v472
    %s474 = scalar_lea.vmem [#allocation2], 256
    %v475 = vld [vmem:[%s474] sm:$0xf]
    %v476 = vld [vmem:[%s474 + $0x4] sm:$0xf]
    %v477 = vld [vmem:[%s474 + $0x8] sm:$0xf]
    %v478 = vld [vmem:[%s474 + $0xc] sm:$0xf]
    %v479 = vld [vmem:[%s474 + $0x10] sm:$0xf]
    %v480 = vld [vmem:[%s474 + $0x14] sm:$0xf]
    %v481 = vld [vmem:[%s474 + $0x18] sm:$0xf]
    %v482 = vld [vmem:[%s474 + $0x1c] sm:$0xf]
    %v483 = vld [vmem:[%s474 + $0x20] sm:$0xf]
    %v484 = vld [vmem:[%s474 + $0x24] sm:$0xf]
    %v485 = vld [vmem:[%s474 + $0x28] sm:$0xf]
    %v486 = vld [vmem:[%s474 + $0x2c] sm:$0xf]
    %v487 = vld [vmem:[%s474 + $0x30] sm:$0xf]
    %v488 = vld [vmem:[%s474 + $0x34] sm:$0xf]
    %v489 = vld [vmem:[%s474 + $0x38] sm:$0xf]
    %v490 = vld [vmem:[%s474 + $0x3c] sm:$0xf]
    %v491 = vperm.slane %v36, 1
    %v508 = vunpack.c.l.b16 %v475
    %v509 = vunpack.c.l.b16 %v476
    %v510 = vunpack.c.l.b16 %v477
    %v511 = vunpack.c.l.b16 %v478
    %v512 = vunpack.c.l.b16 %v479
    %v513 = vunpack.c.l.b16 %v480
    %v514 = vunpack.c.l.b16 %v481
    %v515 = vunpack.c.l.b16 %v482
    %v516 = vunpack.c.l.b16 %v483
    %v517 = vunpack.c.l.b16 %v484
    %v518 = vunpack.c.l.b16 %v485
    %v519 = vunpack.c.l.b16 %v486
    %v520 = vunpack.c.l.b16 %v487
    %v521 = vunpack.c.l.b16 %v488
    %v522 = vunpack.c.l.b16 %v489
    %v523 = vunpack.c.l.b16 %v490
    %v524 = vpack.c.b16 %v509, %v508
    %v525 = vpack.c.b16 %v511, %v510
    %v526 = vpack.c.b16 %v513, %v512
    %v527 = vpack.c.b16 %v515, %v514
    %v528 = vpack.c.b16 %v517, %v516
    %v529 = vpack.c.b16 %v519, %v518
    %v530 = vpack.c.b16 %v521, %v520
    %v531 = vpack.c.b16 %v523, %v522
    %540 = vmatpush.bf16.msra.mxu0 %v531
    %541 = vmatpush.bf16.msra.mxu0 %v530
    %542 = vmatpush.bf16.msra.mxu0 %v529
    %543 = vmatpush.bf16.msra.mxu0 %v528
    %544 = vmatpush.bf16.msra.mxu0 %v527
    %545 = vmatpush.bf16.msra.mxu0 %v526
    %546 = vmatpush.bf16.msra.mxu0 %v525
    %547 = vmatpush.bf16.msra.mxu0 %v524
    %548 = vmatmul.bf16.gmra.mxu0 %v473
    %v549 = vpop.f32.mrf.mxu0
    %v550 = vadd.f32 %v491, %v549
    %v551 = vpop.f32.mrf.mxu0
    %552 = vdwg.mxu0
    %553 = vadd.xlane.f32.xlu0 %v550
    %v554 = vpop.xlane.xlu0 %553
    %v555 = vmul.f32 %v554, %v123
    %v556 = vsub.f32 %v550, %v555
    %v557 = vmul.f32 %v556, %v556
    %558 = vadd.xlane.f32.xlu0 %v557
    %v559 = vpop.xlane.xlu0 %558
    %v560 = vmul.f32 %v559, %v123
    %v561 = vadd.f32 %v560, 1e-05
    %v562 = vrsqrt.pop %v561
    %v563 = vmul.f32 %v562, %v561
    %v564 = vmul.f32 %v563, %v562
    %v565 = vmul.f32 0.5, %v564
    %v566 = vsub.f32 1.5, %v565
    %v567 = vmul.f32 %v562, %v566
    %vm568 = vweird.f32 %v561
    %vm569 = vweird.f32 %v562
    %vm570 = vmor %vm568, %vm569
    %v571 = vsel %vm570, %v562, %v567
    %v572 = vmul.f32 %v556, %v571
    %v573 = vperm.slane %v36, 2
    %v574 = vmul.f32 %v572, %v573
    %v575 = vperm.slane %v36, 3
    %v576 = vadd.f32 %v574, %v575
    %v577 = vmax.f32 %v576, 0.0
    %v578 = vpack.c.bf16 %v577, %v577
    %s579 = scalar_lea.vmem [#allocation2], 320
    %v580 = vld [vmem:[%s579] sm:$0xf]
    %v581 = vld [vmem:[%s579 + $0x4] sm:$0xf]
    %v582 = vld [vmem:[%s579 + $0x8] sm:$0xf]
    %v583 = vld [vmem:[%s579 + $0xc] sm:$0xf]
    %v584 = vld [vmem:[%s579 + $0x10] sm:$0xf]
    %v585 = vld [vmem:[%s579 + $0x14] sm:$0xf]
    %v586 = vld [vmem:[%s579 + $0x18] sm:$0xf]
    %v587 = vld [vmem:[%s579 + $0x1c] sm:$0xf]
    %v588 = vld [vmem:[%s579 + $0x20] sm:$0xf]
    %v589 = vld [vmem:[%s579 + $0x24] sm:$0xf]
    %v590 = vld [vmem:[%s579 + $0x28] sm:$0xf]
    %v591 = vld [vmem:[%s579 + $0x2c] sm:$0xf]
    %v592 = vld [vmem:[%s579 + $0x30] sm:$0xf]
    %v593 = vld [vmem:[%s579 + $0x34] sm:$0xf]
    %v594 = vld [vmem:[%s579 + $0x38] sm:$0xf]
    %v595 = vld [vmem:[%s579 + $0x3c] sm:$0xf]
    %v596 = vperm.slane %v36, 5
    %v613 = vunpack.c.l.b16 %v580
    %v614 = vunpack.c.l.b16 %v581
    %v615 = vunpack.c.l.b16 %v582
    %v616 = vunpack.c.l.b16 %v583
    %v617 = vunpack.c.l.b16 %v584
    %v618 = vunpack.c.l.b16 %v585
    %v619 = vunpack.c.l.b16 %v586
    %v620 = vunpack.c.l.b16 %v587
    %v621 = vunpack.c.l.b16 %v588
    %v622 = vunpack.c.l.b16 %v589
    %v623 = vunpack.c.l.b16 %v590
    %v624 = vunpack.c.l.b16 %v591
    %v625 = vunpack.c.l.b16 %v592
    %v626 = vunpack.c.l.b16 %v593
    %v627 = vunpack.c.l.b16 %v594
    %v628 = vunpack.c.l.b16 %v595
    %v629 = vpack.c.b16 %v614, %v613
    %v630 = vpack.c.b16 %v616, %v615
    %v631 = vpack.c.b16 %v618, %v617
    %v632 = vpack.c.b16 %v620, %v619
    %v633 = vpack.c.b16 %v622, %v621
    %v634 = vpack.c.b16 %v624, %v623
    %v635 = vpack.c.b16 %v626, %v625
    %v636 = vpack.c.b16 %v628, %v627
    %645 = vmatpush.bf16.msra.mxu0 %v636
    %646 = vmatpush.bf16.msra.mxu0 %v635
    %647 = vmatpush.bf16.msra.mxu0 %v634
    %648 = vmatpush.bf16.msra.mxu0 %v633
    %649 = vmatpush.bf16.msra.mxu0 %v632
    %650 = vmatpush.bf16.msra.mxu0 %v631
    %651 = vmatpush.bf16.msra.mxu0 %v630
    %652 = vmatpush.bf16.msra.mxu0 %v629
    %653 = vmatmul.bf16.gmra.mxu0 %v578
    %v654 = vpop.f32.mrf.mxu0
    %v655 = vadd.f32 %v596, %v654
    %v656 = vpop.f32.mrf.mxu0
    %657 = vdwg.mxu0
    %v658 = vlaneseq
    %v659 = vand.u32 %v658, 127
    %vm660 = vcmp.lt.s32.totalorder %v659, 32
    %v661 = vmul.f32 %v655, 1.442695
    %v662 = vpow.pop %v661
    %v663 = vsel %vm660, %v655, %v662
    %664 = vst [vmem:[%s4] sm:$0xff] %v663
    // Predicated region
    $region22: #{cvae_forward.1} parent=1 // pred_check
      _
    $region23: #{cvae_forward.1} parent=1 // pred_check_branch
      %666 = sbr.rel (0) target = $region25
    $region24: #{cvae_forward.1} parent=1 // pred_region
      _
    $region25: #{cvae_forward.1} parent=1 // pred_fallthru
      _
    // Predicated region
    $region26: #{cvae_forward.1} parent=1 // pred_check
      _
    $region27: #{cvae_forward.1} parent=1 // pred_check_branch
      %668 = sbr.rel (0) target = $region29
    $region28: #{cvae_forward.1} parent=1 // pred_region
      _
    $region29: #{cvae_forward.1} parent=1 // pred_fallthru
      _
    %669 = vsyncpa [#allocation3], 1

</llo_original>
